<compile_context>
chip_gen: v7x
topology: tpu7x:2x2x1
jax: 0.10.0
libtpu: 0.0.40
codegen_flags: <defaults>
</compile_context>

<pallas_src>
import functools

import jax
import jax.numpy as jnp
from jax import lax
from jax.experimental import pallas as pl
from jax.experimental.pallas import tpu as pltpu

LANES = 128      # lane width
TR_MAX = 512     # max sublane rows per grid step for the heatmap kernel


# ----------------------------------------------------------------------------
# Kernel 1: fused sigmoid+clamp, focal-loss partial sums and dice partial sums
# over the heatmap.  6 scalars written to SMEM at the last grid step:
#   [pos_loss_sum, neg_loss_sum, num_pos, intersection, pred_sum, gt_sum]
# ----------------------------------------------------------------------------
def _hm_stats_kernel(x_ref, g_ref, out_ref, acc_ref, *, n_valid, tr):
    i = pl.program_id(0)
    nprog = pl.num_programs(0)

    x = x_ref[...]            # (tr, 128) f32
    g = g_ref[...]

    # tail-padding validity mask, built in-kernel (no HBM mask stream)
    row = lax.broadcasted_iota(jnp.int32, x.shape, 0)
    lane = lax.broadcasted_iota(jnp.int32, x.shape, 1)
    gidx = (i * tr + row) * LANES + lane
    v = (gidx < n_valid).astype(jnp.float32)

    p = jnp.clip(jax.nn.sigmoid(x), 0.0001, 1.0 - 0.0001)

    pos = (g == 1.0).astype(jnp.float32) * v
    neg = (g < 1.0).astype(jnp.float32) * v
    one_m_g = 1.0 - g
    neg_w = one_m_g * one_m_g
    neg_w = neg_w * neg_w                      # (1 - g)^4
    one_m_p = 1.0 - p

    @pl.when(i == 0)
    def _():
        acc_ref[...] = jnp.zeros_like(acc_ref)

    # elementwise (VPU-only) accumulation into VMEM vector accumulators
    acc_ref[0] += jnp.log(p) * (one_m_p * one_m_p) * pos
    acc_ref[1] += jnp.log(1.0 - p) * (p * p) * neg_w * neg
    acc_ref[2] += pos
    acc_ref[3] += p * g * v
    acc_ref[4] += p * v
    acc_ref[5] += g * v

    @pl.when(i == nprog - 1)
    def _():
        for k in range(6):                      # single final XLU reduce each
            out_ref[k] = jnp.sum(acc_ref[k])


def hm_stats(hm_logits, gt_hm):
    x = hm_logits.reshape(-1).astype(jnp.float32)
    g = gt_hm.reshape(-1).astype(jnp.float32)
    n = x.shape[0]

    rows = (n + LANES - 1) // LANES
    tr = min(TR_MAX, ((rows + 7) // 8) * 8)
    grid = (rows + tr - 1) // tr
    rows_p = grid * tr
    pad = rows_p * LANES - n
    if pad:  # only materialize a padded copy when the shape doesn't tile
        x = jnp.pad(x, (0, pad))
        g = jnp.pad(g, (0, pad))
    x = x.reshape(rows_p, LANES)
    g = g.reshape(rows_p, LANES)

    kernel = functools.partial(_hm_stats_kernel, n_valid=n, tr=tr)
    return pl.pallas_call(
        kernel,
        out_shape=jax.ShapeDtypeStruct((6,), jnp.float32),
        grid_spec=pltpu.PrefetchScalarGridSpec(
            num_scalar_prefetch=0,
            grid=(grid,),
            in_specs=[pl.BlockSpec((tr, LANES), lambda i: (i, 0))] * 2,
            out_specs=pl.BlockSpec(memory_space=pltpu.MemorySpace.SMEM),
            scratch_shapes=[pltpu.VMEM((6, tr, LANES), jnp.float32)],
        ),
        compiler_params=pltpu.CompilerParams(
            dimension_semantics=("arbitrary",)),
    )(x, g)


# ----------------------------------------------------------------------------
# Kernel 2: masked-gather L1 partial sums (RegL1Loss hot path).
# feat block   : (1, C, THW)   -- HW (lane-dense) tiled by grid axis 1
# idx block    : (1, Cidx, N)  -- Cidx = 1 (shared index) or C (per-channel)
# mask block   : (1, 1, N)
# target block : (1, C, N)
# pred is accumulated over HW tiles in a (C, N) VMEM scratch; the L1/mask sums
# are accumulated over the batch axis into 2 SMEM scalars.
# ----------------------------------------------------------------------------
def _regl1_kernel(feat_ref, idx_ref, mask_ref, tgt_ref, out_ref, pred_acc):
    b = pl.program_id(0)
    t = pl.program_id(1)
    nt = pl.num_programs(1)

    @pl.when(jnp.logical_and(b == 0, t == 0))
    def _():
        out_ref[0] = 0.0
        out_ref[1] = 0.0

    @pl.when(t == 0)
    def _():
        pred_acc[...] = jnp.zeros_like(pred_acc)

    feat = feat_ref[0]                       # (C, THW) f32, HW on lanes
    idx = idx_ref[0]                         # (Cidx, N) int32
    C, thw = feat.shape
    N = idx.shape[1]

    offset = t * thw
    hw = lax.broadcasted_iota(jnp.int32, (C, N, thw), 2) + offset
    onehot = (hw == idx[:, :, None]).astype(jnp.float32)       # (C, N, THW)
    pred_acc[...] += jnp.sum(onehot * feat[:, None, :], axis=-1)  # (C, N)

    @pl.when(t == nt - 1)
    def _():
        m = jnp.broadcast_to(mask_ref[0], pred_acc.shape)      # (C, N)
        tgt = tgt_ref[0]                                       # (C, N)
        pred = pred_acc[...]
        out_ref[0] += jnp.sum(jnp.abs(pred * m - tgt * m))
        out_ref[1] += jnp.sum(m)


def _pick_thw(hw):
    for t in (512, 256, 128):
        if hw % t == 0:
            return t
    return hw            # fall back to one full-extent block


def reg_l1_sums(feat_nchw, index, target, mask, index_all=None):
    B, C, H, W = feat_nchw.shape
    HW = H * W
    N = index.shape[1]

    feat = feat_nchw.reshape(B, C, HW).astype(jnp.float32)     # no transpose
    if index_all is None:
        idx = index.reshape(B, 1, N).astype(jnp.int32)         # shared index
    else:
        idx = jnp.transpose(index_all, (0, 2, 1)).astype(jnp.int32)  # (B,C,N)
    tgt = jnp.transpose(target, (0, 2, 1)).astype(jnp.float32)       # (B,C,N)
    msk = mask.reshape(B, 1, N).astype(jnp.float32)
    c_idx = idx.shape[1]

    thw = _pick_thw(HW)
    nt = HW // thw

    return pl.pallas_call(
        _regl1_kernel,
        out_shape=jax.ShapeDtypeStruct((2,), jnp.float32),
        grid_spec=pltpu.PrefetchScalarGridSpec(
            num_scalar_prefetch=0,
            grid=(B, nt),
            in_specs=[
                pl.BlockSpec((1, C, thw), lambda b, t: (b, 0, t)),
                pl.BlockSpec((1, c_idx, N), lambda b, t: (b, 0, 0)),
                pl.BlockSpec((1, 1, N), lambda b, t: (b, 0, 0)),
                pl.BlockSpec((1, C, N), lambda b, t: (b, 0, 0)),
            ],
            out_specs=pl.BlockSpec(memory_space=pltpu.MemorySpace.SMEM),
            scratch_shapes=[pltpu.VMEM((C, N), jnp.float32)],
        ),
        compiler_params=pltpu.CompilerParams(
            dimension_semantics=("arbitrary", "arbitrary")),
    )(feat, idx, msk, tgt)


# ----------------------------------------------------------------------------
# MOCLoss forward (glue around the two kernels)
# ----------------------------------------------------------------------------
def moc_loss(output, batch, hm_lambda=1.0, wh_lambda=1.0, mov_lambda=0.1):
    # focal + dice stats from one fused pass over the heatmap
    stats = hm_stats(output['hm'], batch['hm'])
    pos_loss, neg_loss, num_pos = stats[0], stats[1], stats[2]
    inter, psum, gsum = stats[3], stats[4], stats[5]

    safe_np = jnp.maximum(num_pos, 1.0)
    hm_loss = jnp.where(num_pos == 0.0, -neg_loss,
                        -(pos_loss + neg_loss) / safe_np)
    dice_loss = 1.0 - (2.0 * inter + 1.0) / (psum + gsum + 1.0)

    mov_sums = reg_l1_sums(output['mov'], batch['index'], batch['mov'],
                           batch['mask'])
    mov_loss = mov_sums[0] / (mov_sums[1] + 0.0001)

    wh_sums = reg_l1_sums(output['wh'], batch['index'], batch['wh'],
                          batch['mask'], index_all=batch['index_all'])
    wh_loss = wh_sums[0] / (wh_sums[1] + 0.0001)

    loss = hm_lambda * hm_loss + wh_lambda * wh_loss + mov_lambda * mov_loss
    loss_stats = {'loss': loss, 'loss_hm': hm_loss, 'loss_mov': mov_loss,
                  'loss_wh': wh_loss, 'dice_loss': dice_loss}
    return loss, loss_stats


# ----------------------------------------------------------------------------
# Pure-JAX reference (mirrors the PyTorch semantics) for a correctness check.
# ----------------------------------------------------------------------------
def _nchw_to_bhwc_flat(x):
    B, C, H, W = x.shape
    return jnp.transpose(x, (0, 2, 3, 1)).reshape(B, H * W, C)


def _ref_moc_loss(output, batch, hm_lambda=1.0, wh_lambda=1.0, mov_lambda=0.1):
    pred = jnp.clip(jax.nn.sigmoid(output['hm']), 0.0001, 1.0 - 0.0001)
    gt = batch['hm']
    pos = (gt == 1.0).astype(jnp.float32)
    neg = (gt < 1.0).astype(jnp.float32)
    nw = (1.0 - gt) ** 4
    pos_l = jnp.sum(jnp.log(pred) * (1.0 - pred) ** 2 * pos)
    neg_l = jnp.sum(jnp.log(1.0 - pred) * pred ** 2 * nw * neg)
    n_pos = jnp.sum(pos)
    hm_loss = jnp.where(n_pos == 0.0, -neg_l,
                        -(pos_l + neg_l) / jnp.maximum(n_pos, 1.0))
    inter = jnp.sum(pred * gt)
    dice_loss = 1.0 - (2.0 * inter + 1.0) / (jnp.sum(pred) + jnp.sum(gt) + 1.0)

    def reg(feat_map, mask, idx_exp, tgt):
        feat = _nchw_to_bhwc_flat(feat_map)
        p = jnp.take_along_axis(feat, idx_exp, axis=1)
        m = jnp.broadcast_to(mask[:, :, None], p.shape).astype(jnp.float32)
        l = jnp.sum(jnp.abs(p * m - tgt * m))
        return l / (jnp.sum(m) + 0.0001)

    B, N = batch['index'].shape
    mov_loss = reg(output['mov'], batch['mask'],
                   jnp.broadcast_to(batch['index'][:, :, None],
                                    (B, N, output['mov'].shape[1])),
                   batch['mov'])
    wh_loss = reg(output['wh'], batch['mask'], batch['index_all'], batch['wh'])
    loss = hm_lambda * hm_loss + wh_lambda * wh_loss + mov_lambda * mov_loss
    return loss, {'loss': loss, 'loss_hm': hm_loss, 'loss_mov': mov_loss,
                  'loss_wh': wh_loss, 'dice_loss': dice_loss}


if __name__ == "__main__":
    key = jax.random.PRNGKey(0)
    ks = jax.random.split(key, 10)

    B, C_HM, H, W = 2, 4, 16, 16
    C_MOV, C_WH, N = 2, 4, 8
    HW = H * W

    hm_logits = jax.random.normal(ks[0], (B, C_HM, H, W), jnp.float32)
    gt_hm = jax.random.uniform(ks[1], (B, C_HM, H, W), jnp.float32) ** 4
    gt_hm = gt_hm.at[:, :, 4, 5].set(1.0)            # exact positives
    gt_hm = gt_hm.at[0, 1, 10, 11].set(1.0)

    mov_out = jax.random.normal(ks[2], (B, C_MOV, H, W), jnp.float32)
    wh_out = jax.random.normal(ks[3], (B, C_WH, H, W), jnp.float32)

    index = jax.random.randint(ks[4], (B, N), 0, HW, jnp.int32)
    index_all = jax.random.randint(ks[5], (B, N, C_WH), 0, HW, jnp.int32)
    mask = (jax.random.uniform(ks[6], (B, N)) > 0.3).astype(jnp.float32)
    mov_t = jax.random.normal(ks[7], (B, N, C_MOV), jnp.float32)
    wh_t = jax.random.normal(ks[8], (B, N, C_WH), jnp.float32)

    output = {'hm': hm_logits, 'mov': mov_out, 'wh': wh_out}
    batch = {'hm': gt_hm, 'mask': mask, 'index': index,
             'index_all': index_all, 'mov': mov_t, 'wh': wh_t}

    loss, loss_stats = moc_loss(output, batch)
    loss = jax.block_until_ready(loss)
    loss_stats = jax.tree_util.tree_map(jax.block_until_ready, loss_stats)

    ref_loss, ref_stats = _ref_moc_loss(output, batch)
    for k in loss_stats:
        assert jnp.allclose(loss_stats[k], ref_stats[k], rtol=1e-3, atol=1e-4), \
            (k, loss_stats[k], ref_stats[k])

    print("KERNEL_OK")
</pallas_src>

<mosaic_0001>
module attributes {stable_mosaic.version = 11 : i64} {
  func.func @_hm_stats_kernel(%arg0: i32, %arg1: memref<16x128xf32, #tpu.memory_space<vmem>>, %arg2: memref<16x128xf32, #tpu.memory_space<vmem>>, %arg3: memref<6xf32, #tpu.memory_space<smem>>, %arg4: memref<6x16x128xf32, #tpu.memory_space<vmem>>) attributes {dimension_semantics = [#tpu.dimension_semantics<arbitrary>], iteration_bounds = array<i64: 1>, scalar_prefetch = 0 : i64, scratch_operands = 1 : i64, tpu.core_type = #tpu.core_type<tc>, window_params = [{transform_indices = @transform_0, window_bounds = array<i64: 16, 128>}, {transform_indices = @transform_1, window_bounds = array<i64: 16, 128>}, {transform_indices = @transform_2, window_bounds = array<i64: 6>}]} {
    %c0 = arith.constant 0 : index
    %c0_0 = arith.constant 0 : index
    %0 = vector.load %arg1[%c0, %c0_0] : memref<16x128xf32, #tpu.memory_space<vmem>>, vector<16x128xf32>
    %c0_1 = arith.constant 0 : index
    %c0_2 = arith.constant 0 : index
    %1 = vector.load %arg2[%c0_1, %c0_2] : memref<16x128xf32, #tpu.memory_space<vmem>>, vector<16x128xf32>
    %2 = tpu.iota {dimensions = array<i32: 0>} : vector<16x128xi32>
    %3 = tpu.iota {dimensions = array<i32: 1>} : vector<16x128xi32>
    %c16_i32 = arith.constant 16 : i32
    %4 = arith.muli %arg0, %c16_i32 : i32
    %5 = vector.broadcast %4 : i32 to vector<16x128xi32>
    %6 = arith.addi %5, %2 : vector<16x128xi32>
    %c128_i32 = arith.constant 128 : i32
    %7 = vector.broadcast %c128_i32 : i32 to vector<16x128xi32>
    %8 = arith.muli %6, %7 : vector<16x128xi32>
    %9 = arith.addi %8, %3 : vector<16x128xi32>
    %c2048_i32 = arith.constant 2048 : i32
    %10 = vector.broadcast %c2048_i32 : i32 to vector<16x128xi32>
    %11 = arith.cmpi slt, %9, %10 : vector<16x128xi32>
    %12 = arith.extui %11 : vector<16x128xi1> to vector<16x128xi32>
    %13 = arith.sitofp %12 : vector<16x128xi32> to vector<16x128xf32>
    %14 = arith.negf %0 : vector<16x128xf32>
    %15 = math.exp %14 : vector<16x128xf32>
    %cst = arith.constant 1.000000e+00 : f32
    %16 = vector.broadcast %cst : f32 to vector<16x128xf32>
    %17 = arith.addf %16, %15 : vector<16x128xf32>
    %18 = arith.divf %16, %17 : vector<16x128xf32>
    %cst_3 = arith.constant 9.99999974E-5 : f32
    %cst_4 = arith.constant 0.999899983 : f32
    %19 = vector.broadcast %cst_3 : f32 to vector<16x128xf32>
    %20 = arith.maximumf %19, %18 : vector<16x128xf32>
    %21 = vector.broadcast %cst_4 : f32 to vector<16x128xf32>
    %22 = arith.minimumf %21, %20 : vector<16x128xf32>
    %cst_5 = arith.constant 1.000000e+00 : f32
    %23 = vector.broadcast %cst_5 : f32 to vector<16x128xf32>
    %24 = arith.cmpf oeq, %1, %23 : vector<16x128xf32>
    %25 = arith.extui %24 : vector<16x128xi1> to vector<16x128xi32>
    %26 = arith.sitofp %25 : vector<16x128xi32> to vector<16x128xf32>
    %27 = arith.mulf %26, %13 : vector<16x128xf32>
    %cst_6 = arith.constant 1.000000e+00 : f32
    %28 = vector.broadcast %cst_6 : f32 to vector<16x128xf32>
    %29 = arith.cmpf olt, %1, %28 : vector<16x128xf32>
    %30 = arith.extui %29 : vector<16x128xi1> to vector<16x128xi32>
    %31 = arith.sitofp %30 : vector<16x128xi32> to vector<16x128xf32>
    %32 = arith.mulf %31, %13 : vector<16x128xf32>
    %cst_7 = arith.constant 1.000000e+00 : f32
    %33 = vector.broadcast %cst_7 : f32 to vector<16x128xf32>
    %34 = arith.subf %33, %1 : vector<16x128xf32>
    %35 = arith.mulf %34, %34 : vector<16x128xf32>
    %36 = arith.mulf %35, %35 : vector<16x128xf32>
    %cst_8 = arith.constant 1.000000e+00 : f32
    %37 = vector.broadcast %cst_8 : f32 to vector<16x128xf32>
    %38 = arith.subf %37, %22 : vector<16x128xf32>
    %c0_i32 = arith.constant 0 : i32
    %39 = arith.cmpi eq, %arg0, %c0_i32 : i32
    %40 = arith.extui %39 : i1 to i32
    %c0_i32_9 = arith.constant 0 : i32
    %41 = arith.cmpi ne, %40, %c0_i32_9 : i32
    scf.if %41 {
      %cst_44 = arith.constant 0.000000e+00 : f32
      %96 = vector.broadcast %cst_44 : f32 to vector<6x16x128xf32>
      %c0_45 = arith.constant 0 : index
      %c0_46 = arith.constant 0 : index
      %c0_47 = arith.constant 0 : index
      %97 = vector.load %arg4[%c0_45, %c0_46, %c0_47] : memref<6x16x128xf32, #tpu.memory_space<vmem>>, vector<6x16x128xf32>
      tpu.vector_store %arg4[%c0_45, %c0_46, %c0_47], %96 {strides = array<i32>} : memref<6x16x128xf32, #tpu.memory_space<vmem>>, vector<6x16x128xf32>,
    } else {
    }
    %c0_10 = arith.constant 0 : index
    %c0_11 = arith.constant 0 : index
    %c0_12 = arith.constant 0 : index
    %42 = vector.load %arg4[%c0_10, %c0_11, %c0_12] : memref<6x16x128xf32, #tpu.memory_space<vmem>>, vector<1x16x128xf32>
    %43 = vector.shape_cast %42 : vector<1x16x128xf32> to vector<16x128xf32>
    %44 = math.log %22 : vector<16x128xf32>
    %45 = arith.mulf %38, %38 : vector<16x128xf32>
    %46 = arith.mulf %44, %45 : vector<16x128xf32>
    %47 = arith.mulf %46, %27 : vector<16x128xf32>
    %48 = arith.addf %43, %47 : vector<16x128xf32>
    %c0_13 = arith.constant 0 : index
    %c0_14 = arith.constant 0 : index
    %c0_15 = arith.constant 0 : index
    %49 = vector.load %arg4[%c0_13, %c0_14, %c0_15] : memref<6x16x128xf32, #tpu.memory_space<vmem>>, vector<1x16x128xf32>
    %50 = vector.shape_cast %49 : vector<1x16x128xf32> to vector<16x128xf32>
    %51 = vector.shape_cast %48 : vector<16x128xf32> to vector<1x16x128xf32>
    tpu.vector_store %arg4[%c0_13, %c0_14, %c0_15], %51 {strides = array<i32>} : memref<6x16x128xf32, #tpu.memory_space<vmem>>, vector<1x16x128xf32>,
    %c1 = arith.constant 1 : index
    %c0_16 = arith.constant 0 : index
    %c0_17 = arith.constant 0 : index
    %52 = vector.load %arg4[%c1, %c0_16, %c0_17] : memref<6x16x128xf32, #tpu.memory_space<vmem>>, vector<1x16x128xf32>
    %53 = vector.shape_cast %52 : vector<1x16x128xf32> to vector<16x128xf32>
    %cst_18 = arith.constant 1.000000e+00 : f32
    %54 = vector.broadcast %cst_18 : f32 to vector<16x128xf32>
    %55 = arith.subf %54, %22 : vector<16x128xf32>
    %56 = math.log %55 : vector<16x128xf32>
    %57 = arith.mulf %22, %22 : vector<16x128xf32>
    %58 = arith.mulf %56, %57 : vector<16x128xf32>
    %59 = arith.mulf %58, %36 : vector<16x128xf32>
    %60 = arith.mulf %59, %32 : vector<16x128xf32>
    %61 = arith.addf %53, %60 : vector<16x128xf32>
    %c1_19 = arith.constant 1 : index
    %c0_20 = arith.constant 0 : index
    %c0_21 = arith.constant 0 : index
    %62 = vector.load %arg4[%c1_19, %c0_20, %c0_21] : memref<6x16x128xf32, #tpu.memory_space<vmem>>, vector<1x16x128xf32>
    %63 = vector.shape_cast %62 : vector<1x16x128xf32> to vector<16x128xf32>
    %64 = vector.shape_cast %61 : vector<16x128xf32> to vector<1x16x128xf32>
    tpu.vector_store %arg4[%c1_19, %c0_20, %c0_21], %64 {strides = array<i32>} : memref<6x16x128xf32, #tpu.memory_space<vmem>>, vector<1x16x128xf32>,
    %c2 = arith.constant 2 : index
    %c0_22 = arith.constant 0 : index
    %c0_23 = arith.constant 0 : index
    %65 = vector.load %arg4[%c2, %c0_22, %c0_23] : memref<6x16x128xf32, #tpu.memory_space<vmem>>, vector<1x16x128xf32>
    %66 = vector.shape_cast %65 : vector<1x16x128xf32> to vector<16x128xf32>
    %67 = arith.addf %66, %27 : vector<16x128xf32>
    %c2_24 = arith.constant 2 : index
    %c0_25 = arith.constant 0 : index
    %c0_26 = arith.constant 0 : index
    %68 = vector.load %arg4[%c2_24, %c0_25, %c0_26] : memref<6x16x128xf32, #tpu.memory_space<vmem>>, vector<1x16x128xf32>
    %69 = vector.shape_cast %68 : vector<1x16x128xf32> to vector<16x128xf32>
    %70 = vector.shape_cast %67 : vector<16x128xf32> to vector<1x16x128xf32>
    tpu.vector_store %arg4[%c2_24, %c0_25, %c0_26], %70 {strides = array<i32>} : memref<6x16x128xf32, #tpu.memory_space<vmem>>, vector<1x16x128xf32>,
    %c3 = arith.constant 3 : index
    %c0_27 = arith.constant 0 : index
    %c0_28 = arith.constant 0 : index
    %71 = vector.load %arg4[%c3, %c0_27, %c0_28] : memref<6x16x128xf32, #tpu.memory_space<vmem>>, vector<1x16x128xf32>
    %72 = vector.shape_cast %71 : vector<1x16x128xf32> to vector<16x128xf32>
    %73 = arith.mulf %22, %1 : vector<16x128xf32>
    %74 = arith.mulf %73, %13 : vector<16x128xf32>
    %75 = arith.addf %72, %74 : vector<16x128xf32>
    %c3_29 = arith.constant 3 : index
    %c0_30 = arith.constant 0 : index
    %c0_31 = arith.constant 0 : index
    %76 = vector.load %arg4[%c3_29, %c0_30, %c0_31] : memref<6x16x128xf32, #tpu.memory_space<vmem>>, vector<1x16x128xf32>
    %77 = vector.shape_cast %76 : vector<1x16x128xf32> to vector<16x128xf32>
    %78 = vector.shape_cast %75 : vector<16x128xf32> to vector<1x16x128xf32>
    tpu.vector_store %arg4[%c3_29, %c0_30, %c0_31], %78 {strides = array<i32>} : memref<6x16x128xf32, #tpu.memory_space<vmem>>, vector<1x16x128xf32>,
    %c4 = arith.constant 4 : index
    %c0_32 = arith.constant 0 : index
    %c0_33 = arith.constant 0 : index
    %79 = vector.load %arg4[%c4, %c0_32, %c0_33] : memref<6x16x128xf32, #tpu.memory_space<vmem>>, vector<1x16x128xf32>
    %80 = vector.shape_cast %79 : vector<1x16x128xf32> to vector<16x128xf32>
    %81 = arith.mulf %22, %13 : vector<16x128xf32>
    %82 = arith.addf %80, %81 : vector<16x128xf32>
    %c4_34 = arith.constant 4 : index
    %c0_35 = arith.constant 0 : index
    %c0_36 = arith.constant 0 : index
    %83 = vector.load %arg4[%c4_34, %c0_35, %c0_36] : memref<6x16x128xf32, #tpu.memory_space<vmem>>, vector<1x16x128xf32>
    %84 = vector.shape_cast %83 : vector<1x16x128xf32> to vector<16x128xf32>
    %85 = vector.shape_cast %82 : vector<16x128xf32> to vector<1x16x128xf32>
    tpu.vector_store %arg4[%c4_34, %c0_35, %c0_36], %85 {strides = array<i32>} : memref<6x16x128xf32, #tpu.memory_space<vmem>>, vector<1x16x128xf32>,
    %c5 = arith.constant 5 : index
    %c0_37 = arith.constant 0 : index
    %c0_38 = arith.constant 0 : index
    %86 = vector.load %arg4[%c5, %c0_37, %c0_38] : memref<6x16x128xf32, #tpu.memory_space<vmem>>, vector<1x16x128xf32>
    %87 = vector.shape_cast %86 : vector<1x16x128xf32> to vector<16x128xf32>
    %88 = arith.mulf %1, %13 : vector<16x128xf32>
    %89 = arith.addf %87, %88 : vector<16x128xf32>
    %c5_39 = arith.constant 5 : index
    %c0_40 = arith.constant 0 : index
    %c0_41 = arith.constant 0 : index
    %90 = vector.load %arg4[%c5_39, %c0_40, %c0_41] : memref<6x16x128xf32, #tpu.memory_space<vmem>>, vector<1x16x128xf32>
    %91 = vector.shape_cast %90 : vector<1x16x128xf32> to vector<16x128xf32>
    %92 = vector.shape_cast %89 : vector<16x128xf32> to vector<1x16x128xf32>
    tpu.vector_store %arg4[%c5_39, %c0_40, %c0_41], %92 {strides = array<i32>} : memref<6x16x128xf32, #tpu.memory_space<vmem>>, vector<1x16x128xf32>,
    %c0_i32_42 = arith.constant 0 : i32
    %93 = arith.cmpi eq, %arg0, %c0_i32_42 : i32
    %94 = arith.extui %93 : i1 to i32
    %c0_i32_43 = arith.constant 0 : i32
    %95 = arith.cmpi ne, %94, %c0_i32_43 : i32
    scf.if %95 {
      %c0_44 = arith.constant 0 : index
      %c0_45 = arith.constant 0 : index
      %c0_46 = arith.constant 0 : index
      %96 = vector.load %arg4[%c0_44, %c0_45, %c0_46] : memref<6x16x128xf32, #tpu.memory_space<vmem>>, vector<1x16x128xf32>
      %97 = vector.shape_cast %96 : vector<1x16x128xf32> to vector<16x128xf32>
      %98 = vector.shape_cast %97 : vector<16x128xf32> to vector<1x16x128xf32>
      %cst_47 = arith.constant dense<0.000000e+00> : vector<1xf32>
      %99 = vector.multi_reduction <add>, %98, %cst_47 [1, 2] : vector<1x16x128xf32> to vector<1xf32>
      %100 = vector.shape_cast %99 : vector<1xf32> to vector<1x1x1xf32>
      %101 = vector.extract %100[0, 0, 0] : f32 from vector<1x1x1xf32>
      %c0_48 = arith.constant 0 : index
      %102 = memref.load %arg3[%c0_48] : memref<6xf32, #tpu.memory_space<smem>>
      memref.store %101, %arg3[%c0_48] : memref<6xf32, #tpu.memory_space<smem>>
      %c1_49 = arith.constant 1 : index
      %c0_50 = arith.constant 0 : index
      %c0_51 = arith.constant 0 : index
      %103 = vector.load %arg4[%c1_49, %c0_50, %c0_51] : memref<6x16x128xf32, #tpu.memory_space<vmem>>, vector<1x16x128xf32>
      %104 = vector.shape_cast %103 : vector<1x16x128xf32> to vector<16x128xf32>
      %105 = vector.shape_cast %104 : vector<16x128xf32> to vector<1x16x128xf32>
      %cst_52 = arith.constant dense<0.000000e+00> : vector<1xf32>
      %106 = vector.multi_reduction <add>, %105, %cst_52 [1, 2] : vector<1x16x128xf32> to vector<1xf32>
      %107 = vector.shape_cast %106 : vector<1xf32> to vector<1x1x1xf32>
      %108 = vector.extract %107[0, 0, 0] : f32 from vector<1x1x1xf32>
      %c1_53 = arith.constant 1 : index
      %109 = memref.load %arg3[%c1_53] : memref<6xf32, #tpu.memory_space<smem>>
      memref.store %108, %arg3[%c1_53] : memref<6xf32, #tpu.memory_space<smem>>
      %c2_54 = arith.constant 2 : index
      %c0_55 = arith.constant 0 : index
      %c0_56 = arith.constant 0 : index
      %110 = vector.load %arg4[%c2_54, %c0_55, %c0_56] : memref<6x16x128xf32, #tpu.memory_space<vmem>>, vector<1x16x128xf32>
      %111 = vector.shape_cast %110 : vector<1x16x128xf32> to vector<16x128xf32>
      %112 = vector.shape_cast %111 : vector<16x128xf32> to vector<1x16x128xf32>
      %cst_57 = arith.constant dense<0.000000e+00> : vector<1xf32>
      %113 = vector.multi_reduction <add>, %112, %cst_57 [1, 2] : vector<1x16x128xf32> to vector<1xf32>
      %114 = vector.shape_cast %113 : vector<1xf32> to vector<1x1x1xf32>
      %115 = vector.extract %114[0, 0, 0] : f32 from vector<1x1x1xf32>
      %c2_58 = arith.constant 2 : index
      %116 = memref.load %arg3[%c2_58] : memref<6xf32, #tpu.memory_space<smem>>
      memref.store %115, %arg3[%c2_58] : memref<6xf32, #tpu.memory_space<smem>>
      %c3_59 = arith.constant 3 : index
      %c0_60 = arith.constant 0 : index
      %c0_61 = arith.constant 0 : index
      %117 = vector.load %arg4[%c3_59, %c0_60, %c0_61] : memref<6x16x128xf32, #tpu.memory_space<vmem>>, vector<1x16x128xf32>
      %118 = vector.shape_cast %117 : vector<1x16x128xf32> to vector<16x128xf32>
      %119 = vector.shape_cast %118 : vector<16x128xf32> to vector<1x16x128xf32>
      %cst_62 = arith.constant dense<0.000000e+00> : vector<1xf32>
      %120 = vector.multi_reduction <add>, %119, %cst_62 [1, 2] : vector<1x16x128xf32> to vector<1xf32>
      %121 = vector.shape_cast %120 : vector<1xf32> to vector<1x1x1xf32>
      %122 = vector.extract %121[0, 0, 0] : f32 from vector<1x1x1xf32>
      %c3_63 = arith.constant 3 : index
      %123 = memref.load %arg3[%c3_63] : memref<6xf32, #tpu.memory_space<smem>>
      memref.store %122, %arg3[%c3_63] : memref<6xf32, #tpu.memory_space<smem>>
      %c4_64 = arith.constant 4 : index
      %c0_65 = arith.constant 0 : index
      %c0_66 = arith.constant 0 : index
      %124 = vector.load %arg4[%c4_64, %c0_65, %c0_66] : memref<6x16x128xf32, #tpu.memory_space<vmem>>, vector<1x16x128xf32>
      %125 = vector.shape_cast %124 : vector<1x16x128xf32> to vector<16x128xf32>
      %126 = vector.shape_cast %125 : vector<16x128xf32> to vector<1x16x128xf32>
      %cst_67 = arith.constant dense<0.000000e+00> : vector<1xf32>
      %127 = vector.multi_reduction <add>, %126, %cst_67 [1, 2] : vector<1x16x128xf32> to vector<1xf32>
      %128 = vector.shape_cast %127 : vector<1xf32> to vector<1x1x1xf32>
      %129 = vector.extract %128[0, 0, 0] : f32 from vector<1x1x1xf32>
      %c4_68 = arith.constant 4 : index
      %130 = memref.load %arg3[%c4_68] : memref<6xf32, #tpu.memory_space<smem>>
      memref.store %129, %arg3[%c4_68] : memref<6xf32, #tpu.memory_space<smem>>
      %c5_69 = arith.constant 5 : index
      %c0_70 = arith.constant 0 : index
      %c0_71 = arith.constant 0 : index
      %131 = vector.load %arg4[%c5_69, %c0_70, %c0_71] : memref<6x16x128xf32, #tpu.memory_space<vmem>>, vector<1x16x128xf32>
      %132 = vector.shape_cast %131 : vector<1x16x128xf32> to vector<16x128xf32>
      %133 = vector.shape_cast %132 : vector<16x128xf32> to vector<1x16x128xf32>
      %cst_72 = arith.constant dense<0.000000e+00> : vector<1xf32>
      %134 = vector.multi_reduction <add>, %133, %cst_72 [1, 2] : vector<1x16x128xf32> to vector<1xf32>
      %135 = vector.shape_cast %134 : vector<1xf32> to vector<1x1x1xf32>
      %136 = vector.extract %135[0, 0, 0] : f32 from vector<1x1x1xf32>
      %c5_73 = arith.constant 5 : index
      %137 = memref.load %arg3[%c5_73] : memref<6xf32, #tpu.memory_space<smem>>
      memref.store %136, %arg3[%c5_73] : memref<6xf32, #tpu.memory_space<smem>>
    } else {
    }
    return
  }
  func.func @transform_0(%arg0: i32) -> (i32, i32) {
    %c0_i32 = arith.constant 0 : i32
    %c0_i32_0 = arith.constant 0 : i32
    return %arg0, %c0_i32 : i32, i32
  }
  func.func @transform_1(%arg0: i32) -> (i32, i32) {
    %c0_i32 = arith.constant 0 : i32
    %c0_i32_0 = arith.constant 0 : i32
    return %arg0, %c0_i32 : i32, i32
  }
  func.func @transform_2(%arg0: i32) -> i32 {
    %c0_i32 = arith.constant 0 : i32
    %c0_i32_0 = arith.constant 0 : i32
    return %c0_i32 : i32
  }
}

</mosaic_0001>

<llo_original>
// kernel: tpu_custom_call.1
$region0: #{tpu_custom_call.1}
  #allocation0 [shape = 'u32[]', space=smem, size = 0x4, offset = 0x4, fixed_abs, tag = 'smem constant byte address 0x4 - core index']
  #allocation1 [shape = 'u32[144,128]{1,0:T(1,128)}', space=vmem, size = 0x12000, scoped, tag = 'internal scratch']
  #allocation2 [shape = 'f32[6,16,128]{2,1,0:T(8,128)}', space=vmem, size = 0xc000, scoped, tag = 'scratch operand']
  %s0 = inlined_call_operand.hbm [shape: f32[16,128], index: 0, kind: input, shape index: {}]
  %s1 = inlined_call_operand.hbm [shape: f32[16,128], index: 1, kind: input, shape index: {}]
  %s2 = inlined_call_operand.hbm [shape: f32[6], index: 2, kind: output, shape index: {}]
  %s3 = sld [smem:[#allocation0]]
  $region34: #{tpu_custom_call.1} parent=0
    _
  %s5 = ssub.s32 1, %s3
  %s6 = scalar_select 0, %s5, %s3
  $region1: #{tpu_custom_call.1} parent=0
    #allocation3 [shape = 'u8[8192]{0}', space=vmem, size = 0x2000, scoped, tag = 'input window, operand 0, single buffered']
    #allocation4 [shape = 's32[1]{0}', space=sflag, size = 0x4, scoped, tag = 'scoped memory for tpu_custom_call.1']
    #allocation5 [shape = 's32[1]{0}', space=sflag, size = 0x4, scoped, tag = 'scoped memory for tpu_custom_call.1']
    #allocation6 [shape = 'u8[8192]{0}', space=vmem, size = 0x2000, scoped, tag = 'input window, operand 1, single buffered']
    #allocation7 [shape = 's32[1]{0}', space=sflag, size = 0x4, scoped, tag = 'scoped memory for tpu_custom_call.1']
    #allocation8 [shape = 'u8[512]{0}', space=smem, size = 0x200, scoped, tag = 'output window, operand 0, single buffered']
    %7 = vsyncpa [#allocation4], 0
    %8 = vsyncpa [#allocation7], 0
    %9 = vsyncpa [#allocation5], 0
    // Predicated region
    $region2: #{tpu_custom_call.1} parent=1 // pred_check
      _
    $region3: #{tpu_custom_call.1} parent=1 // pred_check_branch
      %11 = sbr.rel (0) target = $region5
    $region4: #{tpu_custom_call.1} parent=1 // pred_region
      %s13 = ssub.s32 256, 256
      %14 = vsyncadd [#allocation4], %s13
      %s15 = sshll.u32 [#allocation3], 4
      %s16 = int_to_ptr.vmem [resolvable:$true] %s15
      %21 = dma.hbm_to_vmem [thread:$0]  %s0, 256, %s16, [#allocation4], 128, 128, 8
    $region5: #{tpu_custom_call.1} parent=1 // pred_fallthru
      _
    // Predicated region
    $region6: #{tpu_custom_call.1} parent=1 // pred_check
      _
    $region7: #{tpu_custom_call.1} parent=1 // pred_check_branch
      %23 = sbr.rel (0) target = $region9
    $region8: #{tpu_custom_call.1} parent=1 // pred_region
      %s25 = ssub.s32 256, 256
      %26 = vsyncadd [#allocation7], %s25
      %s27 = sshll.u32 [#allocation6], 4
      %s28 = int_to_ptr.vmem [resolvable:$true] %s27
      %33 = dma.hbm_to_vmem [thread:$0]  %s1, 256, %s28, [#allocation7], 128, 128, 8
    $region9: #{tpu_custom_call.1} parent=1 // pred_fallthru
      _
    // Predicated region
    $region10: #{tpu_custom_call.1} parent=1 // pred_check
      _
    $region11: #{tpu_custom_call.1} parent=1 // pred_check_branch
      %35 = sbr.rel (0) target = $region13
    $region12: #{tpu_custom_call.1} parent=1 // pred_region
      %36 = dma.done [#allocation4], 256
    $region13: #{tpu_custom_call.1} parent=1 // pred_fallthru
      _
    // Predicated region
    $region14: #{tpu_custom_call.1} parent=1 // pred_check
      _
    $region15: #{tpu_custom_call.1} parent=1 // pred_check_branch
      %38 = sbr.rel (0) target = $region17
    $region16: #{tpu_custom_call.1} parent=1 // pred_region
      %39 = dma.done [#allocation7], 256
    $region17: #{tpu_custom_call.1} parent=1 // pred_fallthru
      _
    %v40 = vld [vmem:[#allocation3] sm:$0xff]
    %v41 = vld [vmem:[#allocation3 + $0x8] sm:$0xff]
    %v42 = vld [vmem:[#allocation6] sm:$0xff]
    %v43 = vld [vmem:[#allocation6 + $0x8] sm:$0xff]
    %v44 = vlaneseq
    %v45 = vshrl.u32 %v44, 7
    %v46 = vadd.s32 %v45, 8
    %v47 = vlaneseq
    %v48 = vand.u32 %v47, 127
    %s49 = smul.u32 0, 16
    %v50 = vstv %s49
    %v51 = vadd.s32 %v50, %v45
    %v52 = vadd.s32 %v50, %v46
    %v53 = vmul.u32 %v51, 128
    %v54 = vmul.u32 %v52, 128
    %v55 = vadd.s32 %v53, %v48
    %v56 = vadd.s32 %v54, %v48
    %vm57 = vcmp.lt.s32.totalorder %v55, 2048
    %vm58 = vcmp.lt.s32.totalorder %v56, 2048
    %v59 = vsel %vm57, 1, 0
    %v60 = vsel %vm58, 1, 0
    %v61 = vcvt.s32.f32 %v59
    %v62 = vcvt.s32.f32 %v60
    %v63 = vxor.u32 %v40, 2147483648
    %v64 = vxor.u32 %v41, 2147483648
    %v65 = vmul.f32 %v63, 1.442695
    %v66 = vpow.pop %v65
    %v67 = vmul.f32 %v64, 1.442695
    %v68 = vpow.pop %v67
    %v69 = vadd.f32 %v66, 1.0
    %v70 = vadd.f32 %v68, 1.0
    %v71 = vrcp.pop %v69
    %v72 = vmul.f32 1.0, %v71
    %v73 = vrcp.pop %v70
    %v74 = vmul.f32 1.0, %v73
    %v75 = vmax.f32 %v72, 0.0001
    %v76 = vmax.f32 %v74, 0.0001
    %v77 = vmin.f32 %v75, 0.9999
    %v78 = vmin.f32 %v76, 0.9999
    %vm79 = vcmp.eq.f32.partialorder %v42, 1.0
    %vm80 = vcmp.eq.f32.partialorder %v43, 1.0
    %v81 = vsel %vm79, 1, 0
    %v82 = vsel %vm80, 1, 0
    %v83 = vcvt.s32.f32 %v81
    %v84 = vcvt.s32.f32 %v82
    %v85 = vmul.f32 %v83, %v61
    %v86 = vmul.f32 %v84, %v62
    %vm87 = vcmp.lt.f32.partialorder %v42, 1.0
    %vm88 = vcmp.lt.f32.partialorder %v43, 1.0
    %v89 = vsel %vm87, 1, 0
    %v90 = vsel %vm88, 1, 0
    %v91 = vcvt.s32.f32 %v89
    %v92 = vcvt.s32.f32 %v90
    %v93 = vmul.f32 %v91, %v61
    %v94 = vmul.f32 %v92, %v62
    %v95 = vsub.f32 1.0, %v42
    %v96 = vsub.f32 1.0, %v43
    %v97 = vmul.f32 %v95, %v95
    %v98 = vmul.f32 %v96, %v96
    %v99 = vmul.f32 %v97, %v97
    %v100 = vmul.f32 %v98, %v98
    %v101 = vsub.f32 1.0, %v77
    %v102 = vsub.f32 1.0, %v78
    %p103 = scmp.eq.s32.totalorder 0, 0
    // Predicated region
    $region18: #{tpu_custom_call.1} parent=1 // pred_check
      %p104 = pneg %p103
    $region19: #{tpu_custom_call.1} parent=1 // pred_check_branch
      %106 = sbr.rel (%p104) target = $region21
    $region20: #{tpu_custom_call.1} parent=1 // pred_region
      %107 = vst [vmem:[#allocation2] sm:$0xff] 0.0
      %108 = vst [vmem:[#allocation2 + $0x8] sm:$0xff] 0.0
      %109 = vst [vmem:[#allocation2 + $0x10] sm:$0xff] 0.0
      %110 = vst [vmem:[#allocation2 + $0x18] sm:$0xff] 0.0
      %111 = vst [vmem:[#allocation2 + $0x20] sm:$0xff] 0.0
      %112 = vst [vmem:[#allocation2 + $0x28] sm:$0xff] 0.0
      %113 = vst [vmem:[#allocation2 + $0x30] sm:$0xff] 0.0
      %114 = vst [vmem:[#allocation2 + $0x38] sm:$0xff] 0.0
      %115 = vst [vmem:[#allocation2 + $0x40] sm:$0xff] 0.0
      %116 = vst [vmem:[#allocation2 + $0x48] sm:$0xff] 0.0
      %117 = vst [vmem:[#allocation2 + $0x50] sm:$0xff] 0.0
      %118 = vst [vmem:[#allocation2 + $0x58] sm:$0xff] 0.0
    $region21: #{tpu_custom_call.1} parent=1 // pred_fallthru
      _
    %v119 = vld [vmem:[#allocation2] sm:$0xff]
    %v120 = vld [vmem:[#allocation2 + $0x8] sm:$0xff]
    %v121 = vlog2.pop %v77
    %v122 = vmul.f32 %v121, 0.6931472
    %v123 = vlog2.pop %v78
    %v124 = vmul.f32 %v123, 0.6931472
    %v125 = vmul.f32 %v101, %v101
    %v126 = vmul.f32 %v102, %v102
    %v127 = vmul.f32 %v122, %v125
    %v128 = vmul.f32 %v124, %v126
    %v129 = vmul.f32 %v127, %v85
    %v130 = vmul.f32 %v128, %v86
    %v131 = vadd.f32 %v119, %v129
    %v132 = vadd.f32 %v120, %v130
    %133 = vst [vmem:[#allocation2] sm:$0xff] %v131
    %134 = vst [vmem:[#allocation2 + $0x8] sm:$0xff] %v132
    %s135 = scalar_lea.vmem [#allocation2], 16
    %v136 = vld [vmem:[%s135] sm:$0xff]
    %v137 = vld [vmem:[%s135 + $0x8] sm:$0xff]
    %v138 = vlog2.pop %v101
    %v139 = vmul.f32 %v138, 0.6931472
    %v140 = vlog2.pop %v102
    %v141 = vmul.f32 %v140, 0.6931472
    %v142 = vmul.f32 %v77, %v77
    %v143 = vmul.f32 %v78, %v78
    %v144 = vmul.f32 %v139, %v142
    %v145 = vmul.f32 %v141, %v143
    %v146 = vmul.f32 %v144, %v99
    %v147 = vmul.f32 %v145, %v100
    %v148 = vmul.f32 %v146, %v93
    %v149 = vmul.f32 %v147, %v94
    %v150 = vadd.f32 %v136, %v148
    %v151 = vadd.f32 %v137, %v149
    %152 = vst [vmem:[%s135] sm:$0xff] %v150
    %153 = vst [vmem:[%s135 + $0x8] sm:$0xff] %v151
    %s154 = scalar_lea.vmem [#allocation2], 32
    %v155 = vld [vmem:[%s154] sm:$0xff]
    %v156 = vld [vmem:[%s154 + $0x8] sm:$0xff]
    %v157 = vadd.f32 %v155, %v85
    %v158 = vadd.f32 %v156, %v86
    %159 = vst [vmem:[%s154] sm:$0xff] %v157
    %160 = vst [vmem:[%s154 + $0x8] sm:$0xff] %v158
    %s161 = scalar_lea.vmem [#allocation2], 48
    %v162 = vld [vmem:[%s161] sm:$0xff]
    %v163 = vld [vmem:[%s161 + $0x8] sm:$0xff]
    %v164 = vmul.f32 %v77, %v42
    %v165 = vmul.f32 %v78, %v43
    %v166 = vmul.f32 %v164, %v61
    %v167 = vmul.f32 %v165, %v62
    %v168 = vadd.f32 %v162, %v166
    %v169 = vadd.f32 %v163, %v167
    %170 = vst [vmem:[%s161] sm:$0xff] %v168
    %171 = vst [vmem:[%s161 + $0x8] sm:$0xff] %v169
    %s172 = scalar_lea.vmem [#allocation2], 64
    %v173 = vld [vmem:[%s172] sm:$0xff]
    %v174 = vld [vmem:[%s172 + $0x8] sm:$0xff]
    %v175 = vmul.f32 %v77, %v61
    %v176 = vmul.f32 %v78, %v62
    %v177 = vadd.f32 %v173, %v175
    %v178 = vadd.f32 %v174, %v176
    %179 = vst [vmem:[%s172] sm:$0xff] %v177
    %180 = vst [vmem:[%s172 + $0x8] sm:$0xff] %v178
    %s181 = scalar_lea.vmem [#allocation2], 80
    %v182 = vld [vmem:[%s181] sm:$0xff]
    %v183 = vld [vmem:[%s181 + $0x8] sm:$0xff]
    %v184 = vmul.f32 %v42, %v61
    %v185 = vmul.f32 %v43, %v62
    %v186 = vadd.f32 %v182, %v184
    %v187 = vadd.f32 %v183, %v185
    %188 = vst [vmem:[%s181] sm:$0xff] %v186
    %189 = vst [vmem:[%s181 + $0x8] sm:$0xff] %v187
    // Predicated region
    $region22: #{tpu_custom_call.1} parent=1 // pred_check
      %p190 = pneg %p103
    $region23: #{tpu_custom_call.1} parent=1 // pred_check_branch
      %192 = sbr.rel (%p190) target = $region25
    $region24: #{tpu_custom_call.1} parent=1 // pred_region
      %v193 = vld [vmem:[#allocation2] sm:$0xff]
      %v194 = vld [vmem:[#allocation2 + $0x8] sm:$0xff]
      %v195 = vadd.f32 %v193, %v194
      %196 = vadd.xlane.f32.xlu0 %v195
      %v197 = vpop.xlane.xlu0 %196
      %v198 = vrot.slane %v197, 4
      %v199 = vadd.f32 %v197, %v198
      %v200 = vrot.slane %v199, 2
      %v201 = vadd.f32 %v199, %v200
      %v202 = vrot.slane %v201, 1
      %v203 = vadd.f32 %v201, %v202
      %s204 = vtos %v203
      %s205 = scalar_lea.smem [#allocation8], 0
      %206 = sst [smem:[%s205]] %s204
      %v207 = vld [vmem:[%s135] sm:$0xff]
      %v208 = vld [vmem:[%s135 + $0x8] sm:$0xff]
      %v209 = vadd.f32 %v207, %v208
      %210 = vadd.xlane.f32.xlu0 %v209
      %v211 = vpop.xlane.xlu0 %210
      %v212 = vrot.slane %v211, 4
      %v213 = vadd.f32 %v211, %v212
      %v214 = vrot.slane %v213, 2
      %v215 = vadd.f32 %v213, %v214
      %v216 = vrot.slane %v215, 1
      %v217 = vadd.f32 %v215, %v216
      %s218 = vtos %v217
      %s219 = scalar_lea.smem [#allocation8], 1
      %220 = sst [smem:[%s219]] %s218
      %v221 = vld [vmem:[%s154] sm:$0xff]
      %v222 = vld [vmem:[%s154 + $0x8] sm:$0xff]
      %v223 = vadd.f32 %v221, %v222
      %224 = vadd.xlane.f32.xlu0 %v223
      %v225 = vpop.xlane.xlu0 %224
      %v226 = vrot.slane %v225, 4
      %v227 = vadd.f32 %v225, %v226
      %v228 = vrot.slane %v227, 2
      %v229 = vadd.f32 %v227, %v228
      %v230 = vrot.slane %v229, 1
      %v231 = vadd.f32 %v229, %v230
      %s232 = vtos %v231
      %s233 = scalar_lea.smem [#allocation8], 2
      %234 = sst [smem:[%s233]] %s232
      %v235 = vld [vmem:[%s161] sm:$0xff]
      %v236 = vld [vmem:[%s161 + $0x8] sm:$0xff]
      %v237 = vadd.f32 %v235, %v236
      %238 = vadd.xlane.f32.xlu0 %v237
      %v239 = vpop.xlane.xlu0 %238
      %v240 = vrot.slane %v239, 4
      %v241 = vadd.f32 %v239, %v240
      %v242 = vrot.slane %v241, 2
      %v243 = vadd.f32 %v241, %v242
      %v244 = vrot.slane %v243, 1
      %v245 = vadd.f32 %v243, %v244
      %s246 = vtos %v245
      %s247 = scalar_lea.smem [#allocation8], 3
      %248 = sst [smem:[%s247]] %s246
      %v249 = vld [vmem:[%s172] sm:$0xff]
      %v250 = vld [vmem:[%s172 + $0x8] sm:$0xff]
      %v251 = vadd.f32 %v249, %v250
      %252 = vadd.xlane.f32.xlu0 %v251
      %v253 = vpop.xlane.xlu0 %252
      %v254 = vrot.slane %v253, 4
      %v255 = vadd.f32 %v253, %v254
      %v256 = vrot.slane %v255, 2
      %v257 = vadd.f32 %v255, %v256
      %v258 = vrot.slane %v257, 1
      %v259 = vadd.f32 %v257, %v258
      %s260 = vtos %v259
      %s261 = scalar_lea.smem [#allocation8], 4
      %262 = sst [smem:[%s261]] %s260
      %v263 = vld [vmem:[%s181] sm:$0xff]
      %v264 = vld [vmem:[%s181 + $0x8] sm:$0xff]
      %v265 = vadd.f32 %v263, %v264
      %266 = vadd.xlane.f32.xlu0 %v265
      %v267 = vpop.xlane.xlu0 %266
      %v268 = vrot.slane %v267, 4
      %v269 = vadd.f32 %v267, %v268
      %v270 = vrot.slane %v269, 2
      %v271 = vadd.f32 %v269, %v270
      %v272 = vrot.slane %v271, 1
      %v273 = vadd.f32 %v271, %v272
      %s274 = vtos %v273
      %s275 = scalar_lea.smem [#allocation8], 5
      %276 = sst [smem:[%s275]] %s274
    $region25: #{tpu_custom_call.1} parent=1 // pred_fallthru
      _
    // Predicated region
    $region26: #{tpu_custom_call.1} parent=1 // pred_check
      _
    $region27: #{tpu_custom_call.1} parent=1 // pred_check_branch
      %278 = sbr.rel (0) target = $region29
    $region28: #{tpu_custom_call.1} parent=1 // pred_region
      %s280 = ssub.s32 16, 16
      %281 = vsyncadd [#allocation5], %s280
      %284 = dma.smem_to_hbm [#allocation8], 16, %s2, [#allocation5]
    $region29: #{tpu_custom_call.1} parent=1 // pred_fallthru
      _
    // Predicated region
    $region30: #{tpu_custom_call.1} parent=1 // pred_check
      _
    $region31: #{tpu_custom_call.1} parent=1 // pred_check_branch
      %286 = sbr.rel (0) target = $region33
    $region32: #{tpu_custom_call.1} parent=1 // pred_region
      %287 = dma.done [#allocation5], 16
    $region33: #{tpu_custom_call.1} parent=1 // pred_fallthru
      _
    %288 = sfence
    %289 = vsyncpa [#allocation4], 1
    %290 = vsyncpa [#allocation7], 1
    %291 = vsyncpa [#allocation5], 1

</llo_original>
